<compile_context>
chip_gen: v5e
topology: v5e:2x2
jax: 0.10.0
libtpu: 0.0.40
codegen_flags: <defaults>
</compile_context>

<pallas_src>
import jax
import jax.numpy as jnp
from jax.experimental import pallas as pl
from jax.experimental.pallas import tpu as pltpu


TILE_B = 128       # batch tile = one full lane width; keeps h at 16 vregs (no spills)
HIDDEN_PAD = 128   # hidden dim zero-padded to a full 128-aligned tile


def mlp_kernel(xT_ref, w1_ref, b1_ref, w2_ref, b2_ref,
               w3_ref, b3_ref, w4_ref, b4_ref, o_ref):
    """One batch tile. xT_ref: [F, TILE_B]; weights in [out, in] layout;
    biases as [out, 1] columns; o_ref: [1, TILE_B] (lane-dense)."""
    # fc1 -> relu -> (dropout = identity at eval)
    h = jnp.dot(w1_ref[...], xT_ref[...], preferred_element_type=jnp.float32)
    h = jnp.maximum(h + b1_ref[...], 0.0)            # [Hp, TILE_B]
    # TODO(synk): training-mode dropout (Bernoulli mask via pltpu.prng_*) not
    # implemented; eval-mode dropout is the identity, matching module.eval().

    # fc2 -> relu
    h = jnp.dot(w2_ref[...], h, preferred_element_type=jnp.float32)
    h = jnp.maximum(h + b2_ref[...], 0.0)

    # fc3 -> relu
    h = jnp.dot(w3_ref[...], h, preferred_element_type=jnp.float32)
    h = jnp.maximum(h + b3_ref[...], 0.0)

    # fc4: out_features == 1 -> skip the M=1 MXU pass; VPU multiply + sublane
    # (XLU) reduction gives a lane-dense [1, TILE_B] result directly.
    o = jnp.sum(h * w4_ref[...], axis=0, keepdims=True) + b4_ref[...]
    o_ref[...] = o.astype(o_ref.dtype)


def simple_nn_forward(x, padded_params, *, tile_b=TILE_B):
    """x: [B, input_size] float32.  padded_params: output of pad_params()."""
    B, F = x.shape
    p = padded_params
    n_tiles = pl.cdiv(B, tile_b)
    B_pad = n_tiles * tile_b

    # Batch on the lane axis: kernel consumes x transposed and zero-padded.
    xT = jnp.zeros((F, B_pad), x.dtype).at[:, :B].set(x.T)

    def resident(a):
        # Full array as a single block with a constant index_map -> stays
        # resident in VMEM across the whole batch grid (no re-DMA per tile).
        shape = a.shape
        return pl.BlockSpec(shape, lambda i, _shape=shape: (0,) * len(_shape))

    weight_names = ("w1", "b1", "w2", "b2", "w3", "b3", "w4", "b4")

    out = pl.pallas_call(
        mlp_kernel,
        out_shape=jax.ShapeDtypeStruct((1, B_pad), jnp.float32),
        grid=(n_tiles,),
        in_specs=[pl.BlockSpec((F, tile_b), lambda i: (0, i))]
                 + [resident(p[k]) for k in weight_names],
        out_specs=pl.BlockSpec((1, tile_b), lambda i: (0, i)),
        compiler_params=pltpu.CompilerParams(
            dimension_semantics=("parallel",)),
    )(xT, *(p[k] for k in weight_names))

    return out[0, :B].reshape(B, 1)


def init_params(key, input_size, hidden_size):
    """nn.Linear-style init (U(-1/sqrt(fan_in), +)), PyTorch layout:
    W [out, in], b [out]."""
    def linear(key, fan_in, fan_out):
        kw, kb = jax.random.split(key)
        bound = 1.0 / jnp.sqrt(jnp.float32(fan_in))
        w = jax.random.uniform(kw, (fan_out, fan_in), jnp.float32, -bound, bound)
        b = jax.random.uniform(kb, (fan_out,), jnp.float32, -bound, bound)
        return w, b

    k1, k2, k3, k4 = jax.random.split(key, 4)
    w1, b1 = linear(k1, input_size, hidden_size)
    w2, b2 = linear(k2, hidden_size, hidden_size)
    w3, b3 = linear(k3, hidden_size, hidden_size)
    w4, b4 = linear(k4, hidden_size, 1)
    return dict(w1=w1, b1=b1, w2=w2, b2=b2, w3=w3, b3=b3, w4=w4, b4=b4)


def pad_params(p, hidden_pad=HIDDEN_PAD):
    """Zero-pad the hidden dim to `hidden_pad` and reshape into kernel layout.

    Padded weight rows / bias entries are zero, so padded hidden units stay
    exactly 0 through ReLU and contribute nothing to fc4 (math unchanged)."""
    H, F = p["w1"].shape
    Hp = hidden_pad
    assert Hp >= H

    def pad2(a, rows, cols):
        out = jnp.zeros((rows, cols), a.dtype)
        return out.at[: a.shape[0], : a.shape[1]].set(a)

    return dict(
        w1=pad2(p["w1"], Hp, F),                # [Hp, F]
        b1=pad2(p["b1"].reshape(H, 1), Hp, 1),  # [Hp, 1]
        w2=pad2(p["w2"], Hp, Hp),
        b2=pad2(p["b2"].reshape(H, 1), Hp, 1),
        w3=pad2(p["w3"], Hp, Hp),
        b3=pad2(p["b3"].reshape(H, 1), Hp, 1),
        w4=pad2(p["w4"].T, Hp, 1),              # stored as a column [Hp, 1]
        b4=p["b4"].reshape(1, 1),
    )


def reference_forward(x, p):
    """Pure-JAX reference on the original (unpadded) PyTorch-layout params."""
    h = jnp.maximum(x @ p["w1"].T + p["b1"], 0.0)
    h = jnp.maximum(h @ p["w2"].T + p["b2"], 0.0)
    h = jnp.maximum(h @ p["w3"].T + p["b3"], 0.0)
    return h @ p["w4"].T + p["b4"]


if __name__ == "__main__":
    input_size = 16
    hidden_size = 32

    key = jax.random.PRNGKey(0)
    kx, kp, kx2 = jax.random.split(key, 3)
    params = init_params(kp, input_size, hidden_size)
    padded = pad_params(params)

    # Primary small-shape check (single batch tile).
    batch = 8
    x = jax.random.normal(kx, (batch, input_size), jnp.float32)
    out = simple_nn_forward(x, padded)
    jax.block_until_ready(out)
    ref = reference_forward(x, params)
    assert out.shape == (batch, 1), out.shape
    assert jnp.allclose(out, ref, atol=1e-4, rtol=1e-4), \
        float(jnp.max(jnp.abs(out - ref)))

    # Secondary check exercising multiple batch tiles (ragged last tile).
    batch2 = 200
    x2 = jax.random.normal(kx2, (batch2, input_size), jnp.float32)
    out2 = simple_nn_forward(x2, padded)
    jax.block_until_ready(out2)
    ref2 = reference_forward(x2, params)
    assert out2.shape == (batch2, 1), out2.shape
    assert jnp.allclose(out2, ref2, atol=1e-4, rtol=1e-4), \
        float(jnp.max(jnp.abs(out2 - ref2)))

    print("KERNEL_OK")
</pallas_src>

<mosaic_0001>
module attributes {stable_mosaic.version = 11 : i64} {
  func.func @mlp_kernel(%arg0: i32, %arg1: memref<16x128xf32, #tpu.memory_space<vmem>>, %arg2: memref<128x16xf32, #tpu.memory_space<vmem>>, %arg3: memref<128x1xf32, #tpu.memory_space<vmem>>, %arg4: memref<128x128xf32, #tpu.memory_space<vmem>>, %arg5: memref<128x1xf32, #tpu.memory_space<vmem>>, %arg6: memref<128x128xf32, #tpu.memory_space<vmem>>, %arg7: memref<128x1xf32, #tpu.memory_space<vmem>>, %arg8: memref<128x1xf32, #tpu.memory_space<vmem>>, %arg9: memref<1x1xf32, #tpu.memory_space<vmem>>, %arg10: memref<1x128xf32, #tpu.memory_space<vmem>>) attributes {dimension_semantics = [#tpu.dimension_semantics<parallel>], iteration_bounds = array<i64: 1>, scalar_prefetch = 0 : i64, scratch_operands = 0 : i64, tpu.core_type = #tpu.core_type<tc>, window_params = [{transform_indices = @transform_0, window_bounds = array<i64: 16, 128>}, {pipeline_mode = #tpu.pipeline_mode<synchronous>, transform_indices = @transform_1, window_bounds = array<i64: 128, 16>}, {pipeline_mode = #tpu.pipeline_mode<synchronous>, transform_indices = @transform_2, window_bounds = array<i64: 128, 1>}, {pipeline_mode = #tpu.pipeline_mode<synchronous>, transform_indices = @transform_3, window_bounds = array<i64: 128, 128>}, {pipeline_mode = #tpu.pipeline_mode<synchronous>, transform_indices = @transform_4, window_bounds = array<i64: 128, 1>}, {pipeline_mode = #tpu.pipeline_mode<synchronous>, transform_indices = @transform_5, window_bounds = array<i64: 128, 128>}, {pipeline_mode = #tpu.pipeline_mode<synchronous>, transform_indices = @transform_6, window_bounds = array<i64: 128, 1>}, {pipeline_mode = #tpu.pipeline_mode<synchronous>, transform_indices = @transform_7, window_bounds = array<i64: 128, 1>}, {pipeline_mode = #tpu.pipeline_mode<synchronous>, transform_indices = @transform_8, window_bounds = array<i64: 1, 1>}, {transform_indices = @transform_9, window_bounds = array<i64: 1, 128>}]} {
    %c0 = arith.constant 0 : index
    %c0_0 = arith.constant 0 : index
    %0 = vector.load %arg2[%c0, %c0_0] : memref<128x16xf32, #tpu.memory_space<vmem>>, vector<128x16xf32>
    %c0_1 = arith.constant 0 : index
    %c0_2 = arith.constant 0 : index
    %1 = vector.load %arg1[%c0_1, %c0_2] : memref<16x128xf32, #tpu.memory_space<vmem>>, vector<16x128xf32>
    %cst = arith.constant dense<0.000000e+00> : vector<128x128xf32>
    %2 = tpu.matmul %0, %1, %cst {dimension_numbers = #tpu.dot_dimension_numbers<[1], [0], [0], [1], [0, 0, 1, 1], [], []>} : vector<128x16xf32>, vector<16x128xf32>, vector<128x128xf32> -> vector<128x128xf32>
    %c0_3 = arith.constant 0 : index
    %c0_4 = arith.constant 0 : index
    %3 = vector.load %arg3[%c0_3, %c0_4] : memref<128x1xf32, #tpu.memory_space<vmem>>, vector<128x1xf32>
    %4 = vector.broadcast %3 : vector<128x1xf32> to vector<128x128xf32>
    %5 = arith.addf %2, %4 : vector<128x128xf32>
    %cst_5 = arith.constant 0.000000e+00 : f32
    %6 = vector.broadcast %cst_5 : f32 to vector<128x128xf32>
    %7 = arith.maximumf %5, %6 : vector<128x128xf32>
    %c0_6 = arith.constant 0 : index
    %c0_7 = arith.constant 0 : index
    %8 = vector.load %arg4[%c0_6, %c0_7] : memref<128x128xf32, #tpu.memory_space<vmem>>, vector<128x128xf32>
    %cst_8 = arith.constant dense<0.000000e+00> : vector<128x128xf32>
    %9 = tpu.matmul %8, %7, %cst_8 {dimension_numbers = #tpu.dot_dimension_numbers<[1], [0], [0], [1], [0, 0, 1, 1], [], []>} : vector<128x128xf32>, vector<128x128xf32>, vector<128x128xf32> -> vector<128x128xf32>
    %c0_9 = arith.constant 0 : index
    %c0_10 = arith.constant 0 : index
    %10 = vector.load %arg5[%c0_9, %c0_10] : memref<128x1xf32, #tpu.memory_space<vmem>>, vector<128x1xf32>
    %11 = vector.broadcast %10 : vector<128x1xf32> to vector<128x128xf32>
    %12 = arith.addf %9, %11 : vector<128x128xf32>
    %cst_11 = arith.constant 0.000000e+00 : f32
    %13 = vector.broadcast %cst_11 : f32 to vector<128x128xf32>
    %14 = arith.maximumf %12, %13 : vector<128x128xf32>
    %c0_12 = arith.constant 0 : index
    %c0_13 = arith.constant 0 : index
    %15 = vector.load %arg6[%c0_12, %c0_13] : memref<128x128xf32, #tpu.memory_space<vmem>>, vector<128x128xf32>
    %cst_14 = arith.constant dense<0.000000e+00> : vector<128x128xf32>
    %16 = tpu.matmul %15, %14, %cst_14 {dimension_numbers = #tpu.dot_dimension_numbers<[1], [0], [0], [1], [0, 0, 1, 1], [], []>} : vector<128x128xf32>, vector<128x128xf32>, vector<128x128xf32> -> vector<128x128xf32>
    %c0_15 = arith.constant 0 : index
    %c0_16 = arith.constant 0 : index
    %17 = vector.load %arg7[%c0_15, %c0_16] : memref<128x1xf32, #tpu.memory_space<vmem>>, vector<128x1xf32>
    %18 = vector.broadcast %17 : vector<128x1xf32> to vector<128x128xf32>
    %19 = arith.addf %16, %18 : vector<128x128xf32>
    %cst_17 = arith.constant 0.000000e+00 : f32
    %20 = vector.broadcast %cst_17 : f32 to vector<128x128xf32>
    %21 = arith.maximumf %19, %20 : vector<128x128xf32>
    %c0_18 = arith.constant 0 : index
    %c0_19 = arith.constant 0 : index
    %22 = vector.load %arg8[%c0_18, %c0_19] : memref<128x1xf32, #tpu.memory_space<vmem>>, vector<128x1xf32>
    %23 = vector.broadcast %22 : vector<128x1xf32> to vector<128x128xf32>
    %24 = arith.mulf %21, %23 : vector<128x128xf32>
    %cst_20 = arith.constant dense<0.000000e+00> : vector<128xf32>
    %25 = vector.multi_reduction <add>, %24, %cst_20 [0] : vector<128x128xf32> to vector<128xf32>
    %26 = vector.shape_cast %25 : vector<128xf32> to vector<1x128xf32>
    %c0_21 = arith.constant 0 : index
    %c0_22 = arith.constant 0 : index
    %27 = vector.load %arg9[%c0_21, %c0_22] : memref<1x1xf32, #tpu.memory_space<vmem>>, vector<1x1xf32>
    %28 = vector.broadcast %27 : vector<1x1xf32> to vector<1x128xf32>
    %29 = arith.addf %26, %28 : vector<1x128xf32>
    %c0_23 = arith.constant 0 : index
    %c0_24 = arith.constant 0 : index
    %30 = vector.load %arg10[%c0_23, %c0_24] : memref<1x128xf32, #tpu.memory_space<vmem>>, vector<1x128xf32>
    tpu.vector_store %arg10[%c0_23, %c0_24], %29 {strides = array<i32>} : memref<1x128xf32, #tpu.memory_space<vmem>>, vector<1x128xf32>,
    return
  }
  func.func @transform_0(%arg0: i32) -> (i32, i32) {
    %c0_i32 = arith.constant 0 : i32
    %c0_i32_0 = arith.constant 0 : i32
    return %c0_i32, %arg0 : i32, i32
  }
  func.func @transform_1(%arg0: i32) -> (i32, i32) {
    %c0_i32 = arith.constant 0 : i32
    %c0_i32_0 = arith.constant 0 : i32
    %c0_i32_1 = arith.constant 0 : i32
    return %c0_i32, %c0_i32_0 : i32, i32
  }
  func.func @transform_2(%arg0: i32) -> (i32, i32) {
    %c0_i32 = arith.constant 0 : i32
    %c0_i32_0 = arith.constant 0 : i32
    %c0_i32_1 = arith.constant 0 : i32
    return %c0_i32, %c0_i32_0 : i32, i32
  }
  func.func @transform_3(%arg0: i32) -> (i32, i32) {
    %c0_i32 = arith.constant 0 : i32
    %c0_i32_0 = arith.constant 0 : i32
    %c0_i32_1 = arith.constant 0 : i32
    return %c0_i32, %c0_i32_0 : i32, i32
  }
  func.func @transform_4(%arg0: i32) -> (i32, i32) {
    %c0_i32 = arith.constant 0 : i32
    %c0_i32_0 = arith.constant 0 : i32
    %c0_i32_1 = arith.constant 0 : i32
    return %c0_i32, %c0_i32_0 : i32, i32
  }
  func.func @transform_5(%arg0: i32) -> (i32, i32) {
    %c0_i32 = arith.constant 0 : i32
    %c0_i32_0 = arith.constant 0 : i32
    %c0_i32_1 = arith.constant 0 : i32
    return %c0_i32, %c0_i32_0 : i32, i32
  }
  func.func @transform_6(%arg0: i32) -> (i32, i32) {
    %c0_i32 = arith.constant 0 : i32
    %c0_i32_0 = arith.constant 0 : i32
    %c0_i32_1 = arith.constant 0 : i32
    return %c0_i32, %c0_i32_0 : i32, i32
  }
  func.func @transform_7(%arg0: i32) -> (i32, i32) {
    %c0_i32 = arith.constant 0 : i32
    %c0_i32_0 = arith.constant 0 : i32
    %c0_i32_1 = arith.constant 0 : i32
    return %c0_i32, %c0_i32_0 : i32, i32
  }
  func.func @transform_8(%arg0: i32) -> (i32, i32) {
    %c0_i32 = arith.constant 0 : i32
    %c0_i32_0 = arith.constant 0 : i32
    %c0_i32_1 = arith.constant 0 : i32
    return %c0_i32, %c0_i32_0 : i32, i32
  }
  func.func @transform_9(%arg0: i32) -> (i32, i32) {
    %c0_i32 = arith.constant 0 : i32
    %c0_i32_0 = arith.constant 0 : i32
    return %c0_i32, %arg0 : i32, i32
  }
}

</mosaic_0001>

<llo_original>
// kernel: tpu_custom_call.1
$region0: #{tpu_custom_call.1}
  #allocation0 [shape = 'u32[]', space=smem, size = 0x4, offset = 0x4, fixed_abs, tag = 'smem constant byte address 0x4 - core index']
  #allocation1 [shape = 'u32[72,128]{1,0:T(1,128)}', space=vmem, size = 0x9000, scoped, tag = 'internal scratch']
  #allocation2 [shape = 'f32[1,1]{1,0:T(1,128)S(1)}', space=vmem, size = 0x200, scoped, tag = 'scoped memory for tpu_custom_call.1']
  %s0 = inlined_call_operand.vmem [shape: f32[16,128], index: 0, kind: input, shape index: {}]
  %s1 = inlined_call_operand.vmem [shape: f32[128,16], index: 1, kind: input, shape index: {}]
  %s2 = inlined_call_operand.vmem [shape: f32[128,1], index: 2, kind: input, shape index: {}]
  %s3 = inlined_call_operand.vmem [shape: f32[128,128], index: 3, kind: input, shape index: {}]
  %s4 = inlined_call_operand.vmem [shape: f32[128,1], index: 4, kind: input, shape index: {}]
  %s5 = inlined_call_operand.vmem [shape: f32[128,128], index: 5, kind: input, shape index: {}]
  %s6 = inlined_call_operand.vmem [shape: f32[128,1], index: 6, kind: input, shape index: {}]
  %s7 = inlined_call_operand.vmem [shape: f32[128,1], index: 7, kind: input, shape index: {}]
  %s8 = inlined_call_operand.<no memory space> [shape: f32[1,1], index: 8, kind: input, shape index: {}]
  %s9 = inlined_call_operand.hbm [shape: f32[1,128], index: 9, kind: output, shape index: {}]
  %s10 = sld [smem:[#allocation0]]
  $region46: #{tpu_custom_call.1} parent=0
    _
  %s12 = ssub.s32 1, %s10
  %s13 = scalar_select 0, %s12, %s10
  %v14 = vstv %s8
  %15 = vst [vmem:[#allocation2] sm:$0x1] %v14
  $region1: #{tpu_custom_call.1} parent=0
    #allocation3 [shape = 'u8[512]{0}', space=vmem, size = 0x400, scoped, tag = 'output window, operand 0, single buffered']
    #allocation4 [shape = 's32[1]{0}', space=sflag, size = 0x4, scoped, tag = 'scoped memory for tpu_custom_call.1']
    %16 = vsyncpa [#allocation4], 0
    // Predicated region
    $region2: #{tpu_custom_call.1} parent=1 // pred_check
      _
    $region3: #{tpu_custom_call.1} parent=1 // pred_check_branch
      %18 = sbr.rel (0) target = $region5
    $region4: #{tpu_custom_call.1} parent=1 // pred_region
      _
    $region5: #{tpu_custom_call.1} parent=1 // pred_fallthru
      _
    // Predicated region
    $region6: #{tpu_custom_call.1} parent=1 // pred_check
      _
    $region7: #{tpu_custom_call.1} parent=1 // pred_check_branch
      %20 = sbr.rel (0) target = $region9
    $region8: #{tpu_custom_call.1} parent=1 // pred_region
      _
    $region9: #{tpu_custom_call.1} parent=1 // pred_fallthru
      _
    // Predicated region
    $region10: #{tpu_custom_call.1} parent=1 // pred_check
      _
    $region11: #{tpu_custom_call.1} parent=1 // pred_check_branch
      %22 = sbr.rel (0) target = $region13
    $region12: #{tpu_custom_call.1} parent=1 // pred_region
      _
    $region13: #{tpu_custom_call.1} parent=1 // pred_fallthru
      _
    // Predicated region
    $region14: #{tpu_custom_call.1} parent=1 // pred_check
      _
    $region15: #{tpu_custom_call.1} parent=1 // pred_check_branch
      %24 = sbr.rel (0) target = $region17
    $region16: #{tpu_custom_call.1} parent=1 // pred_region
      _
    $region17: #{tpu_custom_call.1} parent=1 // pred_fallthru
      _
    // Predicated region
    $region18: #{tpu_custom_call.1} parent=1 // pred_check
      _
    $region19: #{tpu_custom_call.1} parent=1 // pred_check_branch
      %26 = sbr.rel (0) target = $region21
    $region20: #{tpu_custom_call.1} parent=1 // pred_region
      _
    $region21: #{tpu_custom_call.1} parent=1 // pred_fallthru
      _
    // Predicated region
    $region22: #{tpu_custom_call.1} parent=1 // pred_check
      _
    $region23: #{tpu_custom_call.1} parent=1 // pred_check_branch
      %28 = sbr.rel (0) target = $region25
    $region24: #{tpu_custom_call.1} parent=1 // pred_region
      _
    $region25: #{tpu_custom_call.1} parent=1 // pred_fallthru
      _
    // Predicated region
    $region26: #{tpu_custom_call.1} parent=1 // pred_check
      _
    $region27: #{tpu_custom_call.1} parent=1 // pred_check_branch
      %30 = sbr.rel (0) target = $region29
    $region28: #{tpu_custom_call.1} parent=1 // pred_region
      _
    $region29: #{tpu_custom_call.1} parent=1 // pred_fallthru
      _
    // Predicated region
    $region30: #{tpu_custom_call.1} parent=1 // pred_check
      _
    $region31: #{tpu_custom_call.1} parent=1 // pred_check_branch
      %32 = sbr.rel (0) target = $region33
    $region32: #{tpu_custom_call.1} parent=1 // pred_region
      _
    $region33: #{tpu_custom_call.1} parent=1 // pred_fallthru
      _
    // Predicated region
    $region34: #{tpu_custom_call.1} parent=1 // pred_check
      _
    $region35: #{tpu_custom_call.1} parent=1 // pred_check_branch
      %34 = sbr.rel (0) target = $region37
    $region36: #{tpu_custom_call.1} parent=1 // pred_region
      _
    $region37: #{tpu_custom_call.1} parent=1 // pred_fallthru
      _
    %v35 = vld [vmem:[%s1] sm:$0xff]
    %v36 = vld [vmem:[%s1 + $0x8] sm:$0xff]
    %v37 = vld [vmem:[%s1 + $0x10] sm:$0xff]
    %v38 = vld [vmem:[%s1 + $0x18] sm:$0xff]
    %v39 = vld [vmem:[%s1 + $0x20] sm:$0xff]
    %v40 = vld [vmem:[%s1 + $0x28] sm:$0xff]
    %v41 = vld [vmem:[%s1 + $0x30] sm:$0xff]
    %v42 = vld [vmem:[%s1 + $0x38] sm:$0xff]
    %v43 = vld [vmem:[%s1 + $0x40] sm:$0xff]
    %v44 = vld [vmem:[%s1 + $0x48] sm:$0xff]
    %v45 = vld [vmem:[%s1 + $0x50] sm:$0xff]
    %v46 = vld [vmem:[%s1 + $0x58] sm:$0xff]
    %v47 = vld [vmem:[%s1 + $0x60] sm:$0xff]
    %v48 = vld [vmem:[%s1 + $0x68] sm:$0xff]
    %v49 = vld [vmem:[%s1 + $0x70] sm:$0xff]
    %v50 = vld [vmem:[%s1 + $0x78] sm:$0xff]
    %v51 = vld [vmem:[%s0] sm:$0xff]
    %v52 = vld [vmem:[%s0 + $0x8] sm:$0xff]
    %v53 = vld [vmem:[%s2] sm:$0xff]
    %v54 = vld [vmem:[%s2 + $0x8] sm:$0xff]
    %v55 = vld [vmem:[%s2 + $0x10] sm:$0xff]
    %v56 = vld [vmem:[%s2 + $0x18] sm:$0xff]
    %v57 = vld [vmem:[%s2 + $0x20] sm:$0xff]
    %v58 = vld [vmem:[%s2 + $0x28] sm:$0xff]
    %v59 = vld [vmem:[%s2 + $0x30] sm:$0xff]
    %v60 = vld [vmem:[%s2 + $0x38] sm:$0xff]
    %v61 = vld [vmem:[%s2 + $0x40] sm:$0xff]
    %v62 = vld [vmem:[%s2 + $0x48] sm:$0xff]
    %v63 = vld [vmem:[%s2 + $0x50] sm:$0xff]
    %v64 = vld [vmem:[%s2 + $0x58] sm:$0xff]
    %v65 = vld [vmem:[%s2 + $0x60] sm:$0xff]
    %v66 = vld [vmem:[%s2 + $0x68] sm:$0xff]
    %v67 = vld [vmem:[%s2 + $0x70] sm:$0xff]
    %v68 = vld [vmem:[%s2 + $0x78] sm:$0xff]
    %70 = vset.pattern.permute.xlu0 0
    %71 = vperm.xlu0 %70, %v53
    %v72 = vpop.permute.xlu0 %71
    %75 = vset.pattern.permute.xlu0 0
    %76 = vperm.xlu0 %75, %v54
    %v77 = vpop.permute.xlu0 %76
    %80 = vset.pattern.permute.xlu0 0
    %81 = vperm.xlu0 %80, %v55
    %v82 = vpop.permute.xlu0 %81
    %85 = vset.pattern.permute.xlu0 0
    %86 = vperm.xlu0 %85, %v56
    %v87 = vpop.permute.xlu0 %86
    %90 = vset.pattern.permute.xlu0 0
    %91 = vperm.xlu0 %90, %v57
    %v92 = vpop.permute.xlu0 %91
    %95 = vset.pattern.permute.xlu0 0
    %96 = vperm.xlu0 %95, %v58
    %v97 = vpop.permute.xlu0 %96
    %100 = vset.pattern.permute.xlu0 0
    %101 = vperm.xlu0 %100, %v59
    %v102 = vpop.permute.xlu0 %101
    %105 = vset.pattern.permute.xlu0 0
    %106 = vperm.xlu0 %105, %v60
    %v107 = vpop.permute.xlu0 %106
    %110 = vset.pattern.permute.xlu0 0
    %111 = vperm.xlu0 %110, %v61
    %v112 = vpop.permute.xlu0 %111
    %115 = vset.pattern.permute.xlu0 0
    %116 = vperm.xlu0 %115, %v62
    %v117 = vpop.permute.xlu0 %116
    %120 = vset.pattern.permute.xlu0 0
    %121 = vperm.xlu0 %120, %v63
    %v122 = vpop.permute.xlu0 %121
    %125 = vset.pattern.permute.xlu0 0
    %126 = vperm.xlu0 %125, %v64
    %v127 = vpop.permute.xlu0 %126
    %130 = vset.pattern.permute.xlu0 0
    %131 = vperm.xlu0 %130, %v65
    %v132 = vpop.permute.xlu0 %131
    %135 = vset.pattern.permute.xlu0 0
    %136 = vperm.xlu0 %135, %v66
    %v137 = vpop.permute.xlu0 %136
    %140 = vset.pattern.permute.xlu0 0
    %141 = vperm.xlu0 %140, %v67
    %v142 = vpop.permute.xlu0 %141
    %145 = vset.pattern.permute.xlu0 0
    %146 = vperm.xlu0 %145, %v68
    %v147 = vpop.permute.xlu0 %146
    %vm149 = vcmask 130048
    %v151 = vsel %vm149, %v35, 0
    %v154 = vsel %vm149, %v36, 0
    %v157 = vsel %vm149, %v37, 0
    %v160 = vsel %vm149, %v38, 0
    %v163 = vsel %vm149, %v39, 0
    %v166 = vsel %vm149, %v40, 0
    %v169 = vsel %vm149, %v41, 0
    %v172 = vsel %vm149, %v42, 0
    %v175 = vsel %vm149, %v43, 0
    %v178 = vsel %vm149, %v44, 0
    %v181 = vsel %vm149, %v45, 0
    %v184 = vsel %vm149, %v46, 0
    %v187 = vsel %vm149, %v47, 0
    %v190 = vsel %vm149, %v48, 0
    %v193 = vsel %vm149, %v49, 0
    %v196 = vsel %vm149, %v50, 0
    %198 = vmatpush.msra.mxu0 0.0
    %199 = vmatpush.msra.mxu0 0.0
    %200 = vmatpush.msra.mxu0 0.0
    %201 = vmatpush.msra.mxu0 0.0
    %202 = vmatpush.msra.mxu0 0.0
    %203 = vmatpush.msra.mxu0 0.0
    %204 = vmatpush.msra.mxu0 0.0
    %205 = vmatpush.msra.mxu0 0.0
    %206 = vmatpush.msra.mxu0 0.0
    %207 = vmatpush.msra.mxu0 0.0
    %208 = vmatpush.msra.mxu0 0.0
    %209 = vmatpush.msra.mxu0 0.0
    %210 = vmatpush.msra.mxu0 0.0
    %211 = vmatpush.msra.mxu0 0.0
    %212 = vmatpush.msra.mxu0 %v52
    %213 = vmatpush.msra.mxu0 %v51
    %214 = vmatmul.f32.gmra.mxu0 %v151
    %v215 = vpop.f32.mrf.mxu0
    %v216 = vadd.f32 %v72, %v215
    %217 = vmatmul.f32.gmra.mxu0 %v154
    %v218 = vpop.f32.mrf.mxu0
    %v219 = vadd.f32 %v77, %v218
    %220 = vmatmul.f32.gmra.mxu0 %v157
    %v221 = vpop.f32.mrf.mxu0
    %v222 = vadd.f32 %v82, %v221
    %223 = vmatmul.f32.gmra.mxu0 %v160
    %v224 = vpop.f32.mrf.mxu0
    %v225 = vadd.f32 %v87, %v224
    %226 = vmatmul.f32.gmra.mxu0 %v163
    %v227 = vpop.f32.mrf.mxu0
    %v228 = vadd.f32 %v92, %v227
    %229 = vmatmul.f32.gmra.mxu0 %v166
    %v230 = vpop.f32.mrf.mxu0
    %v231 = vadd.f32 %v97, %v230
    %232 = vmatmul.f32.gmra.mxu0 %v169
    %v233 = vpop.f32.mrf.mxu0
    %v234 = vadd.f32 %v102, %v233
    %235 = vmatmul.f32.gmra.mxu0 %v172
    %v236 = vpop.f32.mrf.mxu0
    %v237 = vadd.f32 %v107, %v236
    %238 = vmatmul.f32.gmra.mxu0 %v175
    %v239 = vpop.f32.mrf.mxu0
    %v240 = vadd.f32 %v112, %v239
    %241 = vmatmul.f32.gmra.mxu0 %v178
    %v242 = vpop.f32.mrf.mxu0
    %v243 = vadd.f32 %v117, %v242
    %244 = vmatmul.f32.gmra.mxu0 %v181
    %v245 = vpop.f32.mrf.mxu0
    %v246 = vadd.f32 %v122, %v245
    %247 = vmatmul.f32.gmra.mxu0 %v184
    %v248 = vpop.f32.mrf.mxu0
    %v249 = vadd.f32 %v127, %v248
    %250 = vmatmul.f32.gmra.mxu0 %v187
    %v251 = vpop.f32.mrf.mxu0
    %v252 = vadd.f32 %v132, %v251
    %253 = vmatmul.f32.gmra.mxu0 %v190
    %v254 = vpop.f32.mrf.mxu0
    %v255 = vadd.f32 %v137, %v254
    %256 = vmatmul.f32.gmra.mxu0 %v193
    %v257 = vpop.f32.mrf.mxu0
    %v258 = vadd.f32 %v142, %v257
    %259 = vmatmul.f32.gmra.mxu0 %v196
    %v260 = vpop.f32.mrf.mxu0
    %v261 = vadd.f32 %v147, %v260
    %262 = vdwg.mxu0
    %v263 = vmax.f32 %v216, 0.0
    %v264 = vmax.f32 %v219, 0.0
    %v265 = vmax.f32 %v222, 0.0
    %v266 = vmax.f32 %v225, 0.0
    %v267 = vmax.f32 %v228, 0.0
    %v268 = vmax.f32 %v231, 0.0
    %v269 = vmax.f32 %v234, 0.0
    %v270 = vmax.f32 %v237, 0.0
    %v271 = vmax.f32 %v240, 0.0
    %v272 = vmax.f32 %v243, 0.0
    %v273 = vmax.f32 %v246, 0.0
    %v274 = vmax.f32 %v249, 0.0
    %v275 = vmax.f32 %v252, 0.0
    %v276 = vmax.f32 %v255, 0.0
    %v277 = vmax.f32 %v258, 0.0
    %v278 = vmax.f32 %v261, 0.0
    %v279 = vld [vmem:[%s3] sm:$0xff]
    %v280 = vld [vmem:[%s3 + $0x8] sm:$0xff]
    %v281 = vld [vmem:[%s3 + $0x10] sm:$0xff]
    %v282 = vld [vmem:[%s3 + $0x18] sm:$0xff]
    %v283 = vld [vmem:[%s3 + $0x20] sm:$0xff]
    %v284 = vld [vmem:[%s3 + $0x28] sm:$0xff]
    %v285 = vld [vmem:[%s3 + $0x30] sm:$0xff]
    %v286 = vld [vmem:[%s3 + $0x38] sm:$0xff]
    %v287 = vld [vmem:[%s3 + $0x40] sm:$0xff]
    %v288 = vld [vmem:[%s3 + $0x48] sm:$0xff]
    %v289 = vld [vmem:[%s3 + $0x50] sm:$0xff]
    %v290 = vld [vmem:[%s3 + $0x58] sm:$0xff]
    %v291 = vld [vmem:[%s3 + $0x60] sm:$0xff]
    %v292 = vld [vmem:[%s3 + $0x68] sm:$0xff]
    %v293 = vld [vmem:[%s3 + $0x70] sm:$0xff]
    %v294 = vld [vmem:[%s3 + $0x78] sm:$0xff]
    %v295 = vld [vmem:[%s4] sm:$0xff]
    %v296 = vld [vmem:[%s4 + $0x8] sm:$0xff]
    %v297 = vld [vmem:[%s4 + $0x10] sm:$0xff]
    %v298 = vld [vmem:[%s4 + $0x18] sm:$0xff]
    %v299 = vld [vmem:[%s4 + $0x20] sm:$0xff]
    %v300 = vld [vmem:[%s4 + $0x28] sm:$0xff]
    %v301 = vld [vmem:[%s4 + $0x30] sm:$0xff]
    %v302 = vld [vmem:[%s4 + $0x38] sm:$0xff]
    %v303 = vld [vmem:[%s4 + $0x40] sm:$0xff]
    %v304 = vld [vmem:[%s4 + $0x48] sm:$0xff]
    %v305 = vld [vmem:[%s4 + $0x50] sm:$0xff]
    %v306 = vld [vmem:[%s4 + $0x58] sm:$0xff]
    %v307 = vld [vmem:[%s4 + $0x60] sm:$0xff]
    %v308 = vld [vmem:[%s4 + $0x68] sm:$0xff]
    %v309 = vld [vmem:[%s4 + $0x70] sm:$0xff]
    %v310 = vld [vmem:[%s4 + $0x78] sm:$0xff]
    %312 = vset.pattern.permute.xlu0 0
    %313 = vperm.xlu0 %312, %v295
    %v314 = vpop.permute.xlu0 %313
    %317 = vset.pattern.permute.xlu0 0
    %318 = vperm.xlu0 %317, %v296
    %v319 = vpop.permute.xlu0 %318
    %322 = vset.pattern.permute.xlu0 0
    %323 = vperm.xlu0 %322, %v297
    %v324 = vpop.permute.xlu0 %323
    %327 = vset.pattern.permute.xlu0 0
    %328 = vperm.xlu0 %327, %v298
    %v329 = vpop.permute.xlu0 %328
    %332 = vset.pattern.permute.xlu0 0
    %333 = vperm.xlu0 %332, %v299
    %v334 = vpop.permute.xlu0 %333
    %337 = vset.pattern.permute.xlu0 0
    %338 = vperm.xlu0 %337, %v300
    %v339 = vpop.permute.xlu0 %338
    %342 = vset.pattern.permute.xlu0 0
    %343 = vperm.xlu0 %342, %v301
    %v344 = vpop.permute.xlu0 %343
    %347 = vset.pattern.permute.xlu0 0
    %348 = vperm.xlu0 %347, %v302
    %v349 = vpop.permute.xlu0 %348
    %352 = vset.pattern.permute.xlu0 0
    %353 = vperm.xlu0 %352, %v303
    %v354 = vpop.permute.xlu0 %353
    %357 = vset.pattern.permute.xlu0 0
    %358 = vperm.xlu0 %357, %v304
    %v359 = vpop.permute.xlu0 %358
    %362 = vset.pattern.permute.xlu0 0
    %363 = vperm.xlu0 %362, %v305
    %v364 = vpop.permute.xlu0 %363
    %367 = vset.pattern.permute.xlu0 0
    %368 = vperm.xlu0 %367, %v306
    %v369 = vpop.permute.xlu0 %368
    %372 = vset.pattern.permute.xlu0 0
    %373 = vperm.xlu0 %372, %v307
    %v374 = vpop.permute.xlu0 %373
    %377 = vset.pattern.permute.xlu0 0
    %378 = vperm.xlu0 %377, %v308
    %v379 = vpop.permute.xlu0 %378
    %382 = vset.pattern.permute.xlu0 0
    %383 = vperm.xlu0 %382, %v309
    %v384 = vpop.permute.xlu0 %383
    %387 = vset.pattern.permute.xlu0 0
    %388 = vperm.xlu0 %387, %v310
    %v389 = vpop.permute.xlu0 %388
    %391 = vmatpush.msra.mxu0 %v278
    %392 = vmatpush.msra.mxu0 %v277
    %393 = vmatpush.msra.mxu0 %v276
    %394 = vmatpush.msra.mxu0 %v275
    %395 = vmatpush.msra.mxu0 %v274
    %396 = vmatpush.msra.mxu0 %v273
    %397 = vmatpush.msra.mxu0 %v272
    %398 = vmatpush.msra.mxu0 %v271
    %399 = vmatpush.msra.mxu0 %v270
    %400 = vmatpush.msra.mxu0 %v269
    %401 = vmatpush.msra.mxu0 %v268
    %402 = vmatpush.msra.mxu0 %v267
    %403 = vmatpush.msra.mxu0 %v266
    %404 = vmatpush.msra.mxu0 %v265
    %405 = vmatpush.msra.mxu0 %v264
    %406 = vmatpush.msra.mxu0 %v263
    %407 = vmatmul.f32.gmra.mxu0 %v279
    %v408 = vpop.f32.mrf.mxu0
    %v409 = vadd.f32 %v314, %v408
    %410 = vmatmul.f32.gmra.mxu0 %v280
    %v411 = vpop.f32.mrf.mxu0
    %v412 = vadd.f32 %v319, %v411
    %413 = vmatmul.f32.gmra.mxu0 %v281
    %v414 = vpop.f32.mrf.mxu0
    %v415 = vadd.f32 %v324, %v414
    %416 = vmatmul.f32.gmra.mxu0 %v282
    %v417 = vpop.f32.mrf.mxu0
    %v418 = vadd.f32 %v329, %v417
    %419 = vmatmul.f32.gmra.mxu0 %v283
    %v420 = vpop.f32.mrf.mxu0
    %v421 = vadd.f32 %v334, %v420
    %422 = vmatmul.f32.gmra.mxu0 %v284
    %v423 = vpop.f32.mrf.mxu0
    %v424 = vadd.f32 %v339, %v423
    %425 = vmatmul.f32.gmra.mxu0 %v285
    %v426 = vpop.f32.mrf.mxu0
    %v427 = vadd.f32 %v344, %v426
    %428 = vmatmul.f32.gmra.mxu0 %v286
    %v429 = vpop.f32.mrf.mxu0
    %v430 = vadd.f32 %v349, %v429
    %431 = vmatmul.f32.gmra.mxu0 %v287
    %v432 = vpop.f32.mrf.mxu0
    %v433 = vadd.f32 %v354, %v432
    %434 = vmatmul.f32.gmra.mxu0 %v288
    %v435 = vpop.f32.mrf.mxu0
    %v436 = vadd.f32 %v359, %v435
    %437 = vmatmul.f32.gmra.mxu0 %v289
    %v438 = vpop.f32.mrf.mxu0
    %v439 = vadd.f32 %v364, %v438
    %440 = vmatmul.f32.gmra.mxu0 %v290
    %v441 = vpop.f32.mrf.mxu0
    %v442 = vadd.f32 %v369, %v441
    %443 = vmatmul.f32.gmra.mxu0 %v291
    %v444 = vpop.f32.mrf.mxu0
    %v445 = vadd.f32 %v374, %v444
    %446 = vmatmul.f32.gmra.mxu0 %v292
    %v447 = vpop.f32.mrf.mxu0
    %v448 = vadd.f32 %v379, %v447
    %449 = vmatmul.f32.gmra.mxu0 %v293
    %v450 = vpop.f32.mrf.mxu0
    %v451 = vadd.f32 %v384, %v450
    %452 = vmatmul.f32.gmra.mxu0 %v294
    %v453 = vpop.f32.mrf.mxu0
    %v454 = vadd.f32 %v389, %v453
    %455 = vdwg.mxu0
    %v456 = vmax.f32 %v409, 0.0
    %v457 = vmax.f32 %v412, 0.0
    %v458 = vmax.f32 %v415, 0.0
    %v459 = vmax.f32 %v418, 0.0
    %v460 = vmax.f32 %v421, 0.0
    %v461 = vmax.f32 %v424, 0.0
    %v462 = vmax.f32 %v427, 0.0
    %v463 = vmax.f32 %v430, 0.0
    %v464 = vmax.f32 %v433, 0.0
    %v465 = vmax.f32 %v436, 0.0
    %v466 = vmax.f32 %v439, 0.0
    %v467 = vmax.f32 %v442, 0.0
    %v468 = vmax.f32 %v445, 0.0
    %v469 = vmax.f32 %v448, 0.0
    %v470 = vmax.f32 %v451, 0.0
    %v471 = vmax.f32 %v454, 0.0
    %v472 = vld [vmem:[%s5] sm:$0xff]
    %v473 = vld [vmem:[%s5 + $0x8] sm:$0xff]
    %v474 = vld [vmem:[%s5 + $0x10] sm:$0xff]
    %v475 = vld [vmem:[%s5 + $0x18] sm:$0xff]
    %v476 = vld [vmem:[%s5 + $0x20] sm:$0xff]
    %v477 = vld [vmem:[%s5 + $0x28] sm:$0xff]
    %v478 = vld [vmem:[%s5 + $0x30] sm:$0xff]
    %v479 = vld [vmem:[%s5 + $0x38] sm:$0xff]
    %v480 = vld [vmem:[%s5 + $0x40] sm:$0xff]
    %v481 = vld [vmem:[%s5 + $0x48] sm:$0xff]
    %v482 = vld [vmem:[%s5 + $0x50] sm:$0xff]
    %v483 = vld [vmem:[%s5 + $0x58] sm:$0xff]
    %v484 = vld [vmem:[%s5 + $0x60] sm:$0xff]
    %v485 = vld [vmem:[%s5 + $0x68] sm:$0xff]
    %v486 = vld [vmem:[%s5 + $0x70] sm:$0xff]
    %v487 = vld [vmem:[%s5 + $0x78] sm:$0xff]
    %v488 = vld [vmem:[%s6] sm:$0xff]
    %v489 = vld [vmem:[%s6 + $0x8] sm:$0xff]
    %v490 = vld [vmem:[%s6 + $0x10] sm:$0xff]
    %v491 = vld [vmem:[%s6 + $0x18] sm:$0xff]
    %v492 = vld [vmem:[%s6 + $0x20] sm:$0xff]
    %v493 = vld [vmem:[%s6 + $0x28] sm:$0xff]
    %v494 = vld [vmem:[%s6 + $0x30] sm:$0xff]
    %v495 = vld [vmem:[%s6 + $0x38] sm:$0xff]
    %v496 = vld [vmem:[%s6 + $0x40] sm:$0xff]
    %v497 = vld [vmem:[%s6 + $0x48] sm:$0xff]
    %v498 = vld [vmem:[%s6 + $0x50] sm:$0xff]
    %v499 = vld [vmem:[%s6 + $0x58] sm:$0xff]
    %v500 = vld [vmem:[%s6 + $0x60] sm:$0xff]
    %v501 = vld [vmem:[%s6 + $0x68] sm:$0xff]
    %v502 = vld [vmem:[%s6 + $0x70] sm:$0xff]
    %v503 = vld [vmem:[%s6 + $0x78] sm:$0xff]
    %505 = vset.pattern.permute.xlu0 0
    %506 = vperm.xlu0 %505, %v488
    %v507 = vpop.permute.xlu0 %506
    %510 = vset.pattern.permute.xlu0 0
    %511 = vperm.xlu0 %510, %v489
    %v512 = vpop.permute.xlu0 %511
    %515 = vset.pattern.permute.xlu0 0
    %516 = vperm.xlu0 %515, %v490
    %v517 = vpop.permute.xlu0 %516
    %520 = vset.pattern.permute.xlu0 0
    %521 = vperm.xlu0 %520, %v491
    %v522 = vpop.permute.xlu0 %521
    %525 = vset.pattern.permute.xlu0 0
    %526 = vperm.xlu0 %525, %v492
    %v527 = vpop.permute.xlu0 %526
    %530 = vset.pattern.permute.xlu0 0
    %531 = vperm.xlu0 %530, %v493
    %v532 = vpop.permute.xlu0 %531
    %535 = vset.pattern.permute.xlu0 0
    %536 = vperm.xlu0 %535, %v494
    %v537 = vpop.permute.xlu0 %536
    %540 = vset.pattern.permute.xlu0 0
    %541 = vperm.xlu0 %540, %v495
    %v542 = vpop.permute.xlu0 %541
    %545 = vset.pattern.permute.xlu0 0
    %546 = vperm.xlu0 %545, %v496
    %v547 = vpop.permute.xlu0 %546
    %550 = vset.pattern.permute.xlu0 0
    %551 = vperm.xlu0 %550, %v497
    %v552 = vpop.permute.xlu0 %551
    %555 = vset.pattern.permute.xlu0 0
    %556 = vperm.xlu0 %555, %v498
    %v557 = vpop.permute.xlu0 %556
    %560 = vset.pattern.permute.xlu0 0
    %561 = vperm.xlu0 %560, %v499
    %v562 = vpop.permute.xlu0 %561
    %565 = vset.pattern.permute.xlu0 0
    %566 = vperm.xlu0 %565, %v500
    %v567 = vpop.permute.xlu0 %566
    %570 = vset.pattern.permute.xlu0 0
    %571 = vperm.xlu0 %570, %v501
    %v572 = vpop.permute.xlu0 %571
    %575 = vset.pattern.permute.xlu0 0
    %576 = vperm.xlu0 %575, %v502
    %v577 = vpop.permute.xlu0 %576
    %580 = vset.pattern.permute.xlu0 0
    %581 = vperm.xlu0 %580, %v503
    %v582 = vpop.permute.xlu0 %581
    %584 = vmatpush.msra.mxu0 %v471
    %585 = vmatpush.msra.mxu0 %v470
    %586 = vmatpush.msra.mxu0 %v469
    %587 = vmatpush.msra.mxu0 %v468
    %588 = vmatpush.msra.mxu0 %v467
    %589 = vmatpush.msra.mxu0 %v466
    %590 = vmatpush.msra.mxu0 %v465
    %591 = vmatpush.msra.mxu0 %v464
    %592 = vmatpush.msra.mxu0 %v463
    %593 = vmatpush.msra.mxu0 %v462
    %594 = vmatpush.msra.mxu0 %v461
    %595 = vmatpush.msra.mxu0 %v460
    %596 = vmatpush.msra.mxu0 %v459
    %597 = vmatpush.msra.mxu0 %v458
    %598 = vmatpush.msra.mxu0 %v457
    %599 = vmatpush.msra.mxu0 %v456
    %600 = vmatmul.f32.gmra.mxu0 %v472
    %v601 = vpop.f32.mrf.mxu0
    %v602 = vadd.f32 %v507, %v601
    %603 = vmatmul.f32.gmra.mxu0 %v473
    %v604 = vpop.f32.mrf.mxu0
    %v605 = vadd.f32 %v512, %v604
    %606 = vmatmul.f32.gmra.mxu0 %v474
    %v607 = vpop.f32.mrf.mxu0
    %v608 = vadd.f32 %v517, %v607
    %609 = vmatmul.f32.gmra.mxu0 %v475
    %v610 = vpop.f32.mrf.mxu0
    %v611 = vadd.f32 %v522, %v610
    %612 = vmatmul.f32.gmra.mxu0 %v476
    %v613 = vpop.f32.mrf.mxu0
    %v614 = vadd.f32 %v527, %v613
    %615 = vmatmul.f32.gmra.mxu0 %v477
    %v616 = vpop.f32.mrf.mxu0
    %v617 = vadd.f32 %v532, %v616
    %618 = vmatmul.f32.gmra.mxu0 %v478
    %v619 = vpop.f32.mrf.mxu0
    %v620 = vadd.f32 %v537, %v619
    %621 = vmatmul.f32.gmra.mxu0 %v479
    %v622 = vpop.f32.mrf.mxu0
    %v623 = vadd.f32 %v542, %v622
    %624 = vmatmul.f32.gmra.mxu0 %v480
    %v625 = vpop.f32.mrf.mxu0
    %v626 = vadd.f32 %v547, %v625
    %627 = vmatmul.f32.gmra.mxu0 %v481
    %v628 = vpop.f32.mrf.mxu0
    %v629 = vadd.f32 %v552, %v628
    %630 = vmatmul.f32.gmra.mxu0 %v482
    %v631 = vpop.f32.mrf.mxu0
    %v632 = vadd.f32 %v557, %v631
    %633 = vmatmul.f32.gmra.mxu0 %v483
    %v634 = vpop.f32.mrf.mxu0
    %v635 = vadd.f32 %v562, %v634
    %636 = vmatmul.f32.gmra.mxu0 %v484
    %v637 = vpop.f32.mrf.mxu0
    %v638 = vadd.f32 %v567, %v637
    %639 = vmatmul.f32.gmra.mxu0 %v485
    %v640 = vpop.f32.mrf.mxu0
    %v641 = vadd.f32 %v572, %v640
    %642 = vmatmul.f32.gmra.mxu0 %v486
    %v643 = vpop.f32.mrf.mxu0
    %v644 = vadd.f32 %v577, %v643
    %645 = vmatmul.f32.gmra.mxu0 %v487
    %v646 = vpop.f32.mrf.mxu0
    %v647 = vadd.f32 %v582, %v646
    %648 = vdwg.mxu0
    %v649 = vmax.f32 %v602, 0.0
    %v650 = vmax.f32 %v605, 0.0
    %v651 = vmax.f32 %v608, 0.0
    %v652 = vmax.f32 %v611, 0.0
    %v653 = vmax.f32 %v614, 0.0
    %v654 = vmax.f32 %v617, 0.0
    %v655 = vmax.f32 %v620, 0.0
    %v656 = vmax.f32 %v623, 0.0
    %v657 = vmax.f32 %v626, 0.0
    %v658 = vmax.f32 %v629, 0.0
    %v659 = vmax.f32 %v632, 0.0
    %v660 = vmax.f32 %v635, 0.0
    %v661 = vmax.f32 %v638, 0.0
    %v662 = vmax.f32 %v641, 0.0
    %v663 = vmax.f32 %v644, 0.0
    %v664 = vmax.f32 %v647, 0.0
    %v665 = vld [vmem:[%s7] sm:$0xff]
    %v666 = vld [vmem:[%s7 + $0x8] sm:$0xff]
    %v667 = vld [vmem:[%s7 + $0x10] sm:$0xff]
    %v668 = vld [vmem:[%s7 + $0x18] sm:$0xff]
    %v669 = vld [vmem:[%s7 + $0x20] sm:$0xff]
    %v670 = vld [vmem:[%s7 + $0x28] sm:$0xff]
    %v671 = vld [vmem:[%s7 + $0x30] sm:$0xff]
    %v672 = vld [vmem:[%s7 + $0x38] sm:$0xff]
    %v673 = vld [vmem:[%s7 + $0x40] sm:$0xff]
    %v674 = vld [vmem:[%s7 + $0x48] sm:$0xff]
    %v675 = vld [vmem:[%s7 + $0x50] sm:$0xff]
    %v676 = vld [vmem:[%s7 + $0x58] sm:$0xff]
    %v677 = vld [vmem:[%s7 + $0x60] sm:$0xff]
    %v678 = vld [vmem:[%s7 + $0x68] sm:$0xff]
    %v679 = vld [vmem:[%s7 + $0x70] sm:$0xff]
    %v680 = vld [vmem:[%s7 + $0x78] sm:$0xff]
    %682 = vset.pattern.permute.xlu0 0
    %683 = vperm.xlu0 %682, %v665
    %v684 = vpop.permute.xlu0 %683
    %687 = vset.pattern.permute.xlu0 0
    %688 = vperm.xlu0 %687, %v666
    %v689 = vpop.permute.xlu0 %688
    %692 = vset.pattern.permute.xlu0 0
    %693 = vperm.xlu0 %692, %v667
    %v694 = vpop.permute.xlu0 %693
    %697 = vset.pattern.permute.xlu0 0
    %698 = vperm.xlu0 %697, %v668
    %v699 = vpop.permute.xlu0 %698
    %702 = vset.pattern.permute.xlu0 0
    %703 = vperm.xlu0 %702, %v669
    %v704 = vpop.permute.xlu0 %703
    %707 = vset.pattern.permute.xlu0 0
    %708 = vperm.xlu0 %707, %v670
    %v709 = vpop.permute.xlu0 %708
    %712 = vset.pattern.permute.xlu0 0
    %713 = vperm.xlu0 %712, %v671
    %v714 = vpop.permute.xlu0 %713
    %717 = vset.pattern.permute.xlu0 0
    %718 = vperm.xlu0 %717, %v672
    %v719 = vpop.permute.xlu0 %718
    %722 = vset.pattern.permute.xlu0 0
    %723 = vperm.xlu0 %722, %v673
    %v724 = vpop.permute.xlu0 %723
    %727 = vset.pattern.permute.xlu0 0
    %728 = vperm.xlu0 %727, %v674
    %v729 = vpop.permute.xlu0 %728
    %732 = vset.pattern.permute.xlu0 0
    %733 = vperm.xlu0 %732, %v675
    %v734 = vpop.permute.xlu0 %733
    %737 = vset.pattern.permute.xlu0 0
    %738 = vperm.xlu0 %737, %v676
    %v739 = vpop.permute.xlu0 %738
    %742 = vset.pattern.permute.xlu0 0
    %743 = vperm.xlu0 %742, %v677
    %v744 = vpop.permute.xlu0 %743
    %747 = vset.pattern.permute.xlu0 0
    %748 = vperm.xlu0 %747, %v678
    %v749 = vpop.permute.xlu0 %748
    %752 = vset.pattern.permute.xlu0 0
    %753 = vperm.xlu0 %752, %v679
    %v754 = vpop.permute.xlu0 %753
    %757 = vset.pattern.permute.xlu0 0
    %758 = vperm.xlu0 %757, %v680
    %v759 = vpop.permute.xlu0 %758
    %v761 = vmul.f32 %v649, %v684
    %v762 = vmul.f32 %v650, %v689
    %v763 = vmul.f32 %v651, %v694
    %v764 = vmul.f32 %v652, %v699
    %v765 = vmul.f32 %v653, %v704
    %v766 = vmul.f32 %v654, %v709
    %v767 = vmul.f32 %v655, %v714
    %v768 = vmul.f32 %v656, %v719
    %v769 = vmul.f32 %v657, %v724
    %v770 = vmul.f32 %v658, %v729
    %v771 = vmul.f32 %v659, %v734
    %v772 = vmul.f32 %v660, %v739
    %v773 = vmul.f32 %v661, %v744
    %v774 = vmul.f32 %v662, %v749
    %v775 = vmul.f32 %v663, %v754
    %v776 = vmul.f32 %v664, %v759
    %v777 = vadd.f32 %v761, %v762
    %v778 = vadd.f32 %v777, %v763
    %v779 = vadd.f32 %v778, %v764
    %v780 = vadd.f32 %v779, %v765
    %v781 = vadd.f32 %v780, %v766
    %v782 = vadd.f32 %v781, %v767
    %v783 = vadd.f32 %v782, %v768
    %v784 = vadd.f32 %v783, %v769
    %v785 = vadd.f32 %v784, %v770
    %v786 = vadd.f32 %v785, %v771
    %v787 = vadd.f32 %v786, %v772
    %v788 = vadd.f32 %v787, %v773
    %v789 = vadd.f32 %v788, %v774
    %v790 = vadd.f32 %v789, %v775
    %v791 = vadd.f32 %v790, %v776
    %v792 = vrot.slane %v791, 4
    %v793 = vadd.f32 %v791, %v792
    %v794 = vrot.slane %v793, 2
    %v795 = vadd.f32 %v793, %v794
    %v796 = vrot.slane %v795, 1
    %v797 = vadd.f32 %v795, %v796
    %v798 = vld [vmem:[#allocation2] sm:$0x1]
    %800 = vset.pattern.permute.xlu0 0
    %801 = vperm.xlu0 %800, %v798
    %v802 = vpop.permute.xlu0 %801
    %v804 = vperm.slane %v802, 0
    %v805 = vadd.f32 %v797, %v804
    %806 = vst [vmem:[#allocation3] sm:$0x1] %v805
    // Predicated region
    $region38: #{tpu_custom_call.1} parent=1 // pred_check
      _
    $region39: #{tpu_custom_call.1} parent=1 // pred_check_branch
      %808 = sbr.rel (0) target = $region41
    $region40: #{tpu_custom_call.1} parent=1 // pred_region
      %810 = vsyncadd [#allocation4], 0
      %s812 = sshll.u32 [#allocation3], 4
      %s813 = int_to_ptr.vmem [resolvable:$true] %s812
      %s814 = sshll.u32 %s9, 4
      %s815 = int_to_ptr.hbm [resolvable:$true] %s814
      %817 = dma.vmem_to_hbm [thread:$0]  %s813, 16, %s815, [#allocation4]
    $region41: #{tpu_custom_call.1} parent=1 // pred_fallthru
      _
    // Predicated region
    $region42: #{tpu_custom_call.1} parent=1 // pred_check
      _
    $region43: #{tpu_custom_call.1} parent=1 // pred_check_branch
      %819 = sbr.rel (0) target = $region45
    $region44: #{tpu_custom_call.1} parent=1 // pred_region
      %821 = dma.done [#allocation4], 16
    $region45: #{tpu_custom_call.1} parent=1 // pred_fallthru
      _
    %822 = vsyncpa [#allocation4], 1

</llo_original>
